<compile_context>
chip_gen: v7x
topology: tpu7x:2x2x1
jax: 0.10.0
libtpu: 0.0.40
codegen_flags: <defaults>
</compile_context>

<pallas_src>
import jax
import jax.numpy as jnp
from jax.experimental import pallas as pl
from jax.experimental.pallas import tpu as pltpu


def _copy_kernel(x_ref, o_ref):
    # Dense full-tile copy: full vregs on both the load and the store side.
    # The channel shuffle itself happens in the BlockSpec index maps (DMA
    # placement), so no XLU / masked-store / strided-vst work is needed here.
    o_ref[...] = x_ref[...]


def _round_up(x: int, m: int) -> int:
    return (x + m - 1) // m * m


def _pick_hw_block(hwp: int, cpg: int, itemsize: int, outer_steps: int,
                   max_block_bytes: int, min_grid_steps: int = 8) -> int:
    """Pick a lane-block size: a multiple-of-128 divisor of `hwp` whose
    (cpg, blk) tile fits `max_block_bytes`, shrunk (if possible) until the total
    grid has at least `min_grid_steps` steps for pipelining / megacore."""
    m = hwp // 128
    divisors = [d for d in range(1, m + 1) if m % d == 0]
    fitting = [d for d in divisors if 128 * d * cpg * itemsize <= max_block_bytes]
    d = max(fitting) if fitting else 1
    while d > 1 and outer_steps * (m // d) < min_grid_steps:
        d = max(e for e in divisors if e < d)
    return 128 * d


def channel_shuffle(x: jax.Array, groups: int, *,
                    max_block_bytes: int = 8 << 20,
                    vmem_limit_bytes: int = 48 << 20) -> jax.Array:
    N, C, H, W = x.shape
    assert C % groups == 0, "C must be divisible by groups"
    cpg = C // groups
    HW = H * W
    HWp = _round_up(HW, 128)          # padded lane extent (ragged spatial sizes OK)

    blk = _pick_hw_block(HWp, cpg, x.dtype.itemsize, N * groups, max_block_bytes)
    n_hw = HWp // blk                 # exact by construction

    # Free, contiguous reshape: row (n*g + i) holds input channels [i*cpg, (i+1)*cpg).
    x3 = x.reshape(N * groups, cpg, HW)

    # Output laid out as (N, cpg, g * HWp): group i's data of output-slab j lands at
    # lanes [i*HWp, i*HWp + HW) of row j  ->  final channel j*g + i after reshape.
    out3 = pl.pallas_call(
        _copy_kernel,
        out_shape=jax.ShapeDtypeStruct((N, cpg, groups * HWp), x.dtype),
        grid=(N, groups, n_hw),
        in_specs=[pl.BlockSpec((1, cpg, blk),
                               lambda n, i, s: (n * groups + i, 0, s))],
        out_specs=pl.BlockSpec((1, cpg, blk),
                               lambda n, i, s: (n, 0, i * n_hw + s)),
        compiler_params=pltpu.CompilerParams(
            dimension_semantics=("parallel", "parallel", "parallel"),
            vmem_limit_bytes=vmem_limit_bytes,
        ),
        cost_estimate=pl.CostEstimate(
            flops=0, transcendentals=0,
            bytes_accessed=2 * N * C * HW * x.dtype.itemsize),
    )(x3)

    if HWp == HW:
        # (N, cpg, g*HW) is exactly the shuffled (N, C, H, W) memory order.
        return out3.reshape(N, C, H, W)
    # Ragged spatial size: drop the per-group lane padding, then reshape.
    out = out3.reshape(N, cpg, groups, HWp)[..., :HW]
    return out.reshape(N, C, H, W)


def channel_shuffle_ref(x: jax.Array, groups: int) -> jax.Array:
    # Pure-JAX reference mirroring the PyTorch forward exactly.
    N, C, H, W = x.shape
    y = x.reshape(N, groups, C // groups, H, W)
    y = jnp.transpose(y, (0, 2, 1, 3, 4))
    return y.reshape(N, C, H, W)


if __name__ == "__main__":
    key = jax.random.PRNGKey(0)

    # 1) Nominal small shape from the module spec: (N, C, H, W) = (2, 4, 16, 16).
    groups = 2
    x = jax.random.normal(key, (2, 4, 16, 16), dtype=jnp.float32)
    out = jax.block_until_ready(channel_shuffle(x, groups))
    ref = channel_shuffle_ref(x, groups)
    assert out.shape == ref.shape and out.dtype == ref.dtype
    assert bool(jnp.array_equal(out, ref))

    # 2) Force multiple spatial blocks (exercises the 3-D parallel grid / pipeline)
    #    with a deliberately tiny per-block byte budget.
    groups2 = 4
    x2 = jax.random.normal(jax.random.fold_in(key, 1), (2, 8, 16, 32),
                           dtype=jnp.float32)          # HW = 512 -> blk 128, 4 blocks
    out2 = jax.block_until_ready(
        channel_shuffle(x2, groups2, max_block_bytes=2 * 128 * 4))
    ref2 = channel_shuffle_ref(x2, groups2)
    assert bool(jnp.array_equal(out2, ref2))

    # 3) Ragged spatial size (H*W not a multiple of 128) + bf16: exercises the
    #    lane-padding path and a partially out-of-bounds input block.
    groups3 = 3
    x3 = jax.random.normal(jax.random.fold_in(key, 2), (1, 6, 10, 20),
                           dtype=jnp.bfloat16)         # HW = 200 -> HWp = 256
    out3 = jax.block_until_ready(
        channel_shuffle(x3, groups3, max_block_bytes=2 * 128 * 2))
    ref3 = channel_shuffle_ref(x3, groups3)
    assert bool(jnp.array_equal(out3, ref3))

    print("KERNEL_OK")
</pallas_src>

<mosaic_0001>
module attributes {stable_mosaic.version = 11 : i64} {
  func.func @_copy_kernel(%arg0: i32, %arg1: i32, %arg2: i32, %arg3: memref<1x2x128xf32, #tpu.memory_space<vmem>>, %arg4: memref<1x2x128xf32, #tpu.memory_space<vmem>>) attributes {dimension_semantics = [#tpu.dimension_semantics<parallel>, #tpu.dimension_semantics<parallel>, #tpu.dimension_semantics<parallel>], iteration_bounds = array<i64: 2, 2, 2>, scalar_prefetch = 0 : i64, scratch_operands = 0 : i64, tpu.core_type = #tpu.core_type<tc>, window_params = [{transform_indices = @transform_0, window_bounds = array<i64: 1, 2, 128>}, {transform_indices = @transform_1, window_bounds = array<i64: 1, 2, 128>}]} {
    %c0 = arith.constant 0 : index
    %c0_0 = arith.constant 0 : index
    %c0_1 = arith.constant 0 : index
    %0 = vector.load %arg3[%c0, %c0_0, %c0_1] : memref<1x2x128xf32, #tpu.memory_space<vmem>>, vector<1x2x128xf32>
    %c0_2 = arith.constant 0 : index
    %c0_3 = arith.constant 0 : index
    %c0_4 = arith.constant 0 : index
    %1 = vector.load %arg4[%c0_2, %c0_3, %c0_4] : memref<1x2x128xf32, #tpu.memory_space<vmem>>, vector<1x2x128xf32>
    tpu.vector_store %arg4[%c0_2, %c0_3, %c0_4], %0 {strides = array<i32>} : memref<1x2x128xf32, #tpu.memory_space<vmem>>, vector<1x2x128xf32>,
    return
  }
  func.func @transform_0(%arg0: i32, %arg1: i32, %arg2: i32) -> (i32, i32, i32) {
    %c2_i32 = arith.constant 2 : i32
    %0 = arith.muli %arg0, %c2_i32 : i32
    %1 = arith.addi %0, %arg1 : i32
    %c0_i32 = arith.constant 0 : i32
    %c0_i32_0 = arith.constant 0 : i32
    return %1, %c0_i32, %arg2 : i32, i32, i32
  }
  func.func @transform_1(%arg0: i32, %arg1: i32, %arg2: i32) -> (i32, i32, i32) {
    %c2_i32 = arith.constant 2 : i32
    %0 = arith.muli %arg1, %c2_i32 : i32
    %1 = arith.addi %0, %arg2 : i32
    %c0_i32 = arith.constant 0 : i32
    %c0_i32_0 = arith.constant 0 : i32
    return %arg0, %c0_i32, %1 : i32, i32, i32
  }
}

</mosaic_0001>

<llo_original>
// kernel: tpu_custom_call.1
$region0: #{tpu_custom_call.1}
  #allocation0 [shape = 'u32[]', space=smem, size = 0x4, offset = 0x4, fixed_abs, tag = 'smem constant byte address 0x4 - core index']
  #allocation1 [shape = 'u32[144,128]{1,0:T(1,128)}', space=vmem, size = 0x12000, scoped, tag = 'internal scratch']
  %s0 = inlined_call_operand.hbm [shape: f32[4,2,256], index: 0, kind: input, shape index: {}]
  %s1 = inlined_call_operand.hbm [shape: f32[2,2,512], index: 1, kind: output, shape index: {}]
  %s2 = sld [smem:[#allocation0]]
  $region41: #{tpu_custom_call.1} parent=0
    _
  %s4 = ssub.s32 1, %s2
  %s5 = scalar_select 0, %s4, %s2
  $region1: #{tpu_custom_call.1} parent=0
    #allocation2 [shape = 'u8[2048]{0}', space=vmem, size = 0x800, scoped, tag = 'input window, operand 0']
    #allocation3 [shape = 's32[2]{0}', space=sflag, size = 0x8, scoped, tag = 'scoped memory for tpu_custom_call.1']
    #allocation4 [shape = 's32[2]{0}', space=sflag, size = 0x8, scoped, tag = 'scoped memory for tpu_custom_call.1']
    #allocation5 [shape = 'u8[2048]{0}', space=vmem, size = 0x800, scoped, tag = 'output window, operand 0']
    %6 = vsyncpa [#allocation3], 0
    %s7 = scalar_lea.sflag [#allocation3], 1
    %8 = vsyncpa %s7, 0
    %9 = vsyncpa [#allocation4], 0
    %s10 = scalar_lea.sflag [#allocation4], 1
    %11 = vsyncpa %s10, 0
    loop: start=0, step=1, limit=10
    $region2: #{tpu_custom_call.1} parent=1 // loop_pre_header
      _
    $region3: #{tpu_custom_call.1} parent=1 // loop_header
      %s13 = sphi 0, %s17
      %p14 = scmp.ge.s32.totalorder %s13, 10
      %s20 = sphi 0, %s39
      %s21 = sphi 0, %s35
      %s22 = sphi 0, %s31
      %s23 = sphi 0, %s20
      %s24 = sphi 0, %s21
      %s25 = sphi 0, %s22
      %s26 = sphi 0, %s23
      %s27 = sphi 0, %s24
      %s28 = sphi 0, %s25
      %s48 = sphi 0, %s50
      %s51 = sphi 0, %s48
      %s52 = sphi 0, %s51
      %s68 = sphi 0, %s52
      %s80 = sphi 0, %s82
      %s83 = sphi 0, %s80
      %s84 = sphi 0, %s83
      %s100 = sphi 0, %s84
    $region4: #{tpu_custom_call.1} parent=1 // loop_header_branch
      %16 = sbr.rel (%p14) target = $region8
    $region5: #{tpu_custom_call.1} parent=1 // loop_body
      %s18 = ssub.s32 %s13, 1
      %s19 = ssub.s32 %s13, 2
      %s29 = sadd.s32 1, %s22
      %p30 = scmp.ge.s32.totalorder %s29, 2
      %s31 = scalar_select %p30, 0, %s29
      %s32 = sadd.s32 1, %s21
      %s33 = scalar_select %p30, %s32, %s21
      %p34 = scmp.ge.s32.totalorder %s33, 2
      %s35 = scalar_select %p34, 0, %s33
      %s36 = sadd.s32 1, %s20
      %s37 = scalar_select %p34, %s36, %s20
      %p38 = scmp.ge.s32.totalorder %s37, 2
      %s39 = scalar_select %p38, 0, %s37
      %s40 = smul.u32 %s20, 2
      %s41 = sadd.s32 %s40, %s21
      %s42 = smul.u32 %s39, 2
      %s43 = sadd.s32 %s42, %s35
      %s44 = ssub.s32 %s41, %s43
      %s45 = ssub.s32 %s22, %s31
      %s46 = sor.u32 %s44, %s45
      %p47 = scmp.eq.s32.totalorder %s46, 0
      %s49 = sadd.s32 %s48, 1
      %s50 = scalar_select %p47, %s48, %s49
      %p53 = pneg %p47
      %p54 = scmp.eq.s32.totalorder %s13, 7
      %p55 = por %p53, %p54
      %p56 = scmp.ne.s32.totalorder %s48, %s51
      %p57 = scmp.eq.s32.totalorder %s13, 0
      %p58 = por %p56, %p57
      %p59 = scmp.ne.s32.totalorder %s48, %s51
      %p60 = scmp.eq.s32.totalorder %s18, 7
      %p61 = por %p59, %p60
      %p62 = scmp.ne.s32.totalorder %s51, %s52
      %p63 = scmp.eq.s32.totalorder %s18, 0
      %p64 = por %p62, %p63
      %p65 = scmp.ne.s32.totalorder %s51, %s52
      %p66 = scmp.eq.s32.totalorder %s19, 7
      %p67 = por %p65, %p66
      %p69 = scmp.ne.s32.totalorder %s52, %s68
      %p70 = scmp.eq.s32.totalorder %s19, 0
      %p71 = por %p69, %p70
      %s72 = smul.u32 %s21, 2
      %s73 = sadd.s32 %s72, %s22
      %s74 = smul.u32 %s35, 2
      %s75 = sadd.s32 %s74, %s31
      %s76 = ssub.s32 %s20, %s39
      %s77 = ssub.s32 %s73, %s75
      %s78 = sor.u32 %s76, %s77
      %p79 = scmp.eq.s32.totalorder %s78, 0
      %s81 = sadd.s32 %s80, 1
      %s82 = scalar_select %p79, %s80, %s81
      %p85 = pneg %p79
      %p86 = scmp.eq.s32.totalorder %s13, 7
      %p87 = por %p85, %p86
      %p88 = scmp.ne.s32.totalorder %s80, %s83
      %p89 = scmp.eq.s32.totalorder %s13, 0
      %p90 = por %p88, %p89
      %p91 = scmp.ne.s32.totalorder %s80, %s83
      %p92 = scmp.eq.s32.totalorder %s18, 7
      %p93 = por %p91, %p92
      %p94 = scmp.ne.s32.totalorder %s83, %s84
      %p95 = scmp.eq.s32.totalorder %s18, 0
      %p96 = por %p94, %p95
      %p97 = scmp.ne.s32.totalorder %s83, %s84
      %p98 = scmp.eq.s32.totalorder %s19, 7
      %p99 = por %p97, %p98
      %p101 = scmp.ne.s32.totalorder %s84, %s100
      %p102 = scmp.eq.s32.totalorder %s19, 0
      %p103 = por %p101, %p102
      %p104 = scmp.le.s32.totalorder 1, %s13
      %p105 = scmp.lt.s32.totalorder %s13, 9
      %p106 = pnand %p104, %p105
      %p107 = pneg %p106
      // Predicated region
      $region9: #{tpu_custom_call.1} parent=5 // pred_check
        _
      $region10: #{tpu_custom_call.1} parent=5 // pred_check_branch
        %109 = sbr.rel (%p106) target = $region12
      $region11: #{tpu_custom_call.1} parent=5 // pred_region
        %s110 = ssub.s32 %s13, 1
      $region12: #{tpu_custom_call.1} parent=5 // pred_fallthru
        _
      %p111 = scmp.lt.s32.totalorder %s13, 8
      // Predicated region
      $region13: #{tpu_custom_call.1} parent=5 // pred_check
        %p112 = pneg %p111
      $region14: #{tpu_custom_call.1} parent=5 // pred_check_branch
        %114 = sbr.rel (%p112) target = $region16
      $region15: #{tpu_custom_call.1} parent=5 // pred_region
        // Predicated region
        $region17: #{tpu_custom_call.1} parent=15 // pred_check
          %p115 = pneg %p58
        $region18: #{tpu_custom_call.1} parent=15 // pred_check_branch
          %117 = sbr.rel (%p115) target = $region20
        $region19: #{tpu_custom_call.1} parent=15 // pred_region
          %s118 = sand.u32 %s48, 1
          %s119 = scalar_lea.sflag [#allocation3], %s118
          %s120 = sand.u32 %s48, 1
          %s121 = smul.addr %s120, 2
          %s122 = scalar_lea.vmem [#allocation2], %s121
          %s123 = smul.u32 %s20, 2
          %s124 = sadd.s32 %s123, %s21
          %s126 = ssub.s32 32, 32
          %127 = vsyncadd %s119, %s126
          %s128 = smul.addr %s124, 2
          %s129 = sadd.s32 %s22, %s128
          %s130 = smul.addr %s129, 32
          %s131 = scalar_lea.hbm %s0, %s130
          %s133 = sshll.u32 %s122, 4
          %s134 = int_to_ptr.vmem [resolvable:$true] %s133
          %136 = dma.hbm_to_vmem [thread:$0]  %s131, 32, %s134, %s119
        $region20: #{tpu_custom_call.1} parent=15 // pred_fallthru
          _
      $region16: #{tpu_custom_call.1} parent=5 // pred_fallthru
        _
      %p137 = scmp.le.s32.totalorder 1, %s13
      %p138 = scmp.lt.s32.totalorder %s13, 9
      %p139 = pnand %p137, %p138
      %p140 = pneg %p139
      // Predicated region
      $region21: #{tpu_custom_call.1} parent=5 // pred_check
        _
      $region22: #{tpu_custom_call.1} parent=5 // pred_check_branch
        %142 = sbr.rel (%p139) target = $region24
      $region23: #{tpu_custom_call.1} parent=5 // pred_region
        %s143 = ssub.s32 %s13, 1
        %s144 = sand.u32 %s51, 1
        %s145 = scalar_lea.sflag [#allocation3], %s144
        %s146 = sand.u32 %s51, 1
        %s147 = smul.addr %s146, 2
        %s148 = scalar_lea.vmem [#allocation2], %s147
        // Predicated region
        $region25: #{tpu_custom_call.1} parent=23 // pred_check
          %p149 = pneg %p64
        $region26: #{tpu_custom_call.1} parent=23 // pred_check_branch
          %151 = sbr.rel (%p149) target = $region28
        $region27: #{tpu_custom_call.1} parent=23 // pred_region
          %152 = dma.done %s145, 32
        $region28: #{tpu_custom_call.1} parent=23 // pred_fallthru
          _
        %s153 = sand.u32 %s51, 1
        %s154 = scalar_lea.sflag [#allocation3], %s153
        %s155 = sand.u32 %s51, 1
        %s156 = smul.addr %s155, 2
        %s157 = scalar_lea.vmem [#allocation2], %s156
        %p158 = pneg %p64
        %p159 = pneg %p61
        %p160 = pneg %p96
        %p161 = pneg %p93
        %s162 = sand.u32 %s83, 1
        %s163 = scalar_lea.sflag [#allocation4], %s162
        %s164 = sand.u32 %s83, 1
        %s165 = smul.addr %s164, 2
        %s166 = scalar_lea.vmem [#allocation5], %s165
        %s167 = smul.u32 %s23, 2
        %s168 = sadd.s32 %s167, %s24
        %s169 = smul.u32 %s24, 2
        %s170 = sadd.s32 %s169, %s25
        %v171 = vld [vmem:[%s148] sm:$0x3]
        %172 = vst [vmem:[%s166] sm:$0x3] %v171
        %s173 = sand.u32 %s83, 1
        %s174 = scalar_lea.sflag [#allocation4], %s173
        %s175 = sand.u32 %s83, 1
        %s176 = smul.addr %s175, 2
        %s177 = scalar_lea.vmem [#allocation5], %s176
        // Predicated region
        $region29: #{tpu_custom_call.1} parent=23 // pred_check
          %p178 = pneg %p93
        $region30: #{tpu_custom_call.1} parent=23 // pred_check_branch
          %180 = sbr.rel (%p178) target = $region32
        $region31: #{tpu_custom_call.1} parent=23 // pred_region
          %s181 = smul.u32 %s24, 2
          %s182 = sadd.s32 %s181, %s25
          %s184 = ssub.s32 32, 32
          %185 = vsyncadd %s174, %s184
          %s186 = smul.addr %s23, 4
          %s187 = sadd.s32 %s182, %s186
          %s188 = smul.addr %s187, 32
          %s189 = scalar_lea.hbm %s1, %s188
          %s191 = sshll.u32 %s177, 4
          %s192 = int_to_ptr.vmem [resolvable:$true] %s191
          %194 = dma.vmem_to_hbm [thread:$0]  %s192, 32, %s189, %s174
        $region32: #{tpu_custom_call.1} parent=23 // pred_fallthru
          _
      $region24: #{tpu_custom_call.1} parent=5 // pred_fallthru
        _
      %p195 = scmp.le.s32.totalorder 2, %s13
      // Predicated region
      $region33: #{tpu_custom_call.1} parent=5 // pred_check
        %p196 = pneg %p195
      $region34: #{tpu_custom_call.1} parent=5 // pred_check_branch
        %198 = sbr.rel (%p196) target = $region36
      $region35: #{tpu_custom_call.1} parent=5 // pred_region
        %s199 = ssub.s32 %s13, 2
        // Predicated region
        $region37: #{tpu_custom_call.1} parent=35 // pred_check
          %p200 = pneg %p99
        $region38: #{tpu_custom_call.1} parent=35 // pred_check_branch
          %202 = sbr.rel (%p200) target = $region40
        $region39: #{tpu_custom_call.1} parent=35 // pred_region
          %s203 = sand.u32 %s84, 1
          %s204 = scalar_lea.sflag [#allocation4], %s203
          %s205 = sand.u32 %s84, 1
          %s206 = smul.addr %s205, 2
          %s207 = scalar_lea.vmem [#allocation5], %s206
          %208 = dma.done %s204, 32
        $region40: #{tpu_custom_call.1} parent=35 // pred_fallthru
          _
      $region36: #{tpu_custom_call.1} parent=5 // pred_fallthru
        _
    $region6: #{tpu_custom_call.1} parent=1 // loop_footer
      %s17 = sadd.s32 1, %s13
    $region7: #{tpu_custom_call.1} parent=1 // loop_footer_branch
      %12 = sbr.rel target = $region3
    $region8: #{tpu_custom_call.1} parent=1 // loop_exit
      _
    %209 = vsyncpa [#allocation3], 1
    %s210 = scalar_lea.sflag [#allocation3], 1
    %211 = vsyncpa %s210, 1
    %212 = vsyncpa [#allocation4], 1
    %s213 = scalar_lea.sflag [#allocation4], 1
    %214 = vsyncpa %s213, 1

</llo_original>
